<compile_context>
chip_gen: v7x
topology: tpu7x:2x2x1
jax: 0.10.0
libtpu: 0.0.40
codegen_flags: <defaults>
</compile_context>

<pallas_src>
import functools

import jax
import jax.numpy as jnp
import numpy as np
from jax.experimental import pallas as pl
from jax.experimental.pallas import tpu as pltpu


def _cdiv(a, b):
    return (a + b - 1) // b


def _round_up(a, b):
    return _cdiv(a, b) * b


def _mixprop_kernel(aT_ref, x_ref, wbd_ref, b_ref, o_ref, *, gdep):
    # aT_ref : (Vp, Vp)                row-normalized adjacency, transposed, zero-padded
    # x_ref  : (tb*c_in, Vp)           activations, row n*c_in + c, lane v  <->  x[n, v, c]
    # wbd_ref: (gdep+1, tb*c_out, tb*c_in)  per-hop block-diagonal projection weights
    # b_ref  : (tb*c_out, 1)           bias pre-tiled across the batch tile
    # o_ref  : (tb*c_out, Vp)          output, row n*c_out + o, lane v
    aT = aT_ref[...]

    # Single hoisted broadcast: initialize the VMEM-resident accumulator (the output
    # block itself) with the pre-tiled bias.
    o_ref[...] = jnp.broadcast_to(b_ref[...], o_ref.shape)

    g = x_ref[...]  # hop-0 activations for this batch tile (f32)
    for k in range(gdep + 1):
        # One fused block-diagonal projection per hop:
        #   (tb*c_out, tb*c_in) @ (tb*c_in, Vp) -> accumulate into o_ref.
        o_ref[...] += jnp.dot(wbd_ref[k], g, preferred_element_type=jnp.float32)
        if k < gdep:
            # TODO(synk): dropout between hops omitted (identity / eval mode).
            # Single lane-dense MXU call for the whole batch tile; hop-matmul inputs may
            # be bf16 (hop_dtype) while the accumulation stays f32.
            g = jnp.dot(g.astype(aT.dtype), aT, preferred_element_type=jnp.float32)


def mixprop_forward(x, adj, weight, bias, gdep, *, hop_dtype=jnp.float32):
    """x: (N, V, C) f32, adj: (V, V), weight: (c_out, (gdep+1)*C) (PyTorch layout),
    bias: (c_out,). Returns (N, V, c_out).

    hop_dtype: dtype used for the adjacency / hop matmul inputs. Use jnp.bfloat16 to
    halve the (Vp, Vp) adjacency VMEM footprint (recommended for large V / v7x) when
    the accuracy budget allows; defaults to f32 for exactness.
    """
    N, V, C = x.shape
    c_out, fan_in = weight.shape
    assert fan_in == (gdep + 1) * C

    f32 = jnp.float32
    x = x.astype(f32)
    adj = adj.astype(f32)
    weight = weight.astype(f32)
    bias = bias.astype(f32)

    # --- Normalization hoisted out of the kernel (done once, not per grid step). ---
    # NOTE: like the PyTorch module, assumes every adjacency row sum is nonzero; the
    # zero-padded pad rows are safe only because normalization happens BEFORE padding.
    a_norm = adj / jnp.sum(adj, axis=1, keepdims=True)
    aT = a_norm.T  # hop becomes g @ aT (nodes on lanes)

    # --- Tiling: nodes (lanes) padded to a multiple of 128; fold tb batches into the
    #     matmul M / sublane dimension. Target tb*C >= 256 rows to fill the 256-wide
    #     MXU on v6e/v7x (also a multiple of 128 for v5e's 128-wide MXU), but prefer
    #     >= 2 grid steps when the batch allows it so v7x's two TensorCores both work.
    Vp = _round_up(V, 128)
    tb = max(1, min(N, _cdiv(256, C)))
    if tb == N and N > 1:
        tb = _cdiv(N, 2)
    while (tb * C) % 8 != 0 or (tb * c_out) % 8 != 0:
        tb += 1  # keep block sublane dims 8-aligned
    Np = _round_up(N, tb)
    grid = (Np // tb,)

    # Padded / cast adjacency (zero pad rows & cols contribute nothing).
    aT_p = jnp.zeros((Vp, Vp), hop_dtype).at[:V, :V].set(aT.astype(hop_dtype))

    # Folded / transposed activations: xt[n*C + c, v] = x[n, v, c].
    # TODO(synk): this transpose+pad materializes a padded copy of x in HBM; for large
    # inputs fuse it into the kernel via a 3-D BlockSpec + in-kernel XLU transpose.
    xt = jnp.transpose(x, (0, 2, 1)).reshape(N * C, V)
    xt_p = jnp.zeros((Np * C, Vp), f32).at[:N * C, :V].set(xt)

    # Per-hop block-diagonal projection weights (built once in the wrapper):
    #   w_bd[k, n*c_out + o, m*C + c] = (n == m) * weight[o, k*C + c]
    w_hops = weight.reshape(c_out, gdep + 1, C).transpose(1, 0, 2)      # (gdep+1, c_out, C)
    eye_tb = jnp.eye(tb, dtype=f32)
    w_bd = jnp.einsum("nm,koc->knomc", eye_tb, w_hops).reshape(
        gdep + 1, tb * c_out, tb * C)

    # Bias pre-tiled across the batch tile: row n*c_out + o -> bias[o].
    b_tile = jnp.tile(bias, tb).reshape(tb * c_out, 1)

    # --- Cost estimate (helps XLA schedule the surrounding pad/transpose ops). ---
    steps = Np // tb
    hop_flops = 2 * gdep * (tb * C) * Vp * Vp
    proj_flops = 2 * (gdep + 1) * (tb * c_out) * (tb * C) * Vp
    itemsize_hop = jnp.dtype(hop_dtype).itemsize
    bytes_accessed = (
        Np * C * Vp * 4                 # activations in
        + Np * c_out * Vp * 4           # output
        + Vp * Vp * itemsize_hop        # adjacency (read once, resident)
        + (gdep + 1) * tb * c_out * tb * C * 4
        + tb * c_out * 4
    )
    cost = pl.CostEstimate(
        flops=steps * (hop_flops + proj_flops),
        transcendentals=0,
        bytes_accessed=bytes_accessed,
    )

    kernel = functools.partial(_mixprop_kernel, gdep=gdep)
    out_shape = jax.ShapeDtypeStruct((Np * c_out, Vp), f32)

    def build(single_buffer_invariants):
        # Grid-invariant inputs (adjacency, weights, bias) don't need double buffers;
        # single-buffering them halves the dominant (Vp, Vp) adjacency VMEM footprint.
        inv = ({"pipeline_mode": pl.Buffered(buffer_count=1)}
               if single_buffer_invariants else {})
        return pl.pallas_call(
            kernel,
            out_shape=out_shape,
            grid=grid,
            in_specs=[
                pl.BlockSpec((Vp, Vp), lambda i: (0, 0), **inv),            # adj^T (shared)
                pl.BlockSpec((tb * C, Vp), lambda i: (i, 0)),               # activations
                pl.BlockSpec((gdep + 1, tb * c_out, tb * C),
                             lambda i: (0, 0, 0), **inv),                   # block-diag W
                pl.BlockSpec((tb * c_out, 1), lambda i: (0, 0), **inv),     # tiled bias
            ],
            out_specs=pl.BlockSpec((tb * c_out, Vp), lambda i: (i, 0)),
            compiler_params=pltpu.CompilerParams(
                dimension_semantics=("parallel",),
                vmem_limit_bytes=64 * 1024 * 1024,  # <= physical VMEM on v5e/v6e/v7x
            ),
            cost_estimate=cost,
        )

    args = (aT_p, xt_p, w_bd, b_tile)
    try:
        out_t = build(True)(*args)
    except Exception:
        # Fallback if this jax build rejects Buffered(1) single-buffering on the
        # pallas_call pipeline; default double-buffering is correct, just uses more VMEM.
        out_t = build(False)(*args)

    # Unfold: (Np*c_out, Vp) -> (N, V, c_out)
    out = out_t.reshape(Np, c_out, Vp)[:N, :, :V]
    return jnp.transpose(out, (0, 2, 1))


def mixprop_reference(x, adj, weight, bias, gdep):
    d = adj.sum(axis=1)
    a = adj / d[:, None]
    h = x
    hops = [h]
    for _ in range(gdep):
        h = jnp.einsum("nwl,vw->nvl", h, a)
        hops.append(h)
    ho = jnp.concatenate(hops, axis=2)
    return ho @ weight.T + bias


if __name__ == "__main__":
    # Small shapes consistent with the module: batch N, nodes V, channels c_in.
    N, V, c_in, c_out, gdep = 2, 16, 4, 8, 2

    key = jax.random.PRNGKey(0)
    k_x, k_adj, k_w, k_b = jax.random.split(key, 4)

    x = jax.random.normal(k_x, (N, V, c_in), dtype=jnp.float32)
    # Positive adjacency so row sums are nonzero (as the module implicitly assumes).
    adj = jax.random.uniform(k_adj, (V, V), dtype=jnp.float32, minval=0.1, maxval=1.0)

    # nn.Linear((gdep+1)*c_in, c_out): weight (c_out, (gdep+1)*c_in), bias (c_out,).
    fan_in = (gdep + 1) * c_in
    bound = 1.0 / np.sqrt(fan_in)
    w = jax.random.uniform(k_w, (c_out, fan_in), dtype=jnp.float32,
                           minval=-bound, maxval=bound)
    b = jax.random.uniform(k_b, (c_out,), dtype=jnp.float32,
                           minval=-bound, maxval=bound)

    out = mixprop_forward(x, adj, w, b, gdep)
    out = jax.block_until_ready(out)

    ref = mixprop_reference(x, adj, w, b, gdep)
    np.testing.assert_allclose(np.asarray(out), np.asarray(ref), rtol=1e-4, atol=1e-4)

    print("KERNEL_OK")
</pallas_src>

<mosaic_0001>
module attributes {stable_mosaic.version = 11 : i64} {
  func.func @_mixprop_kernel(%arg0: i32, %arg1: memref<128x128xf32, #tpu.memory_space<vmem>>, %arg2: memref<8x128xf32, #tpu.memory_space<vmem>>, %arg3: memref<3x16x8xf32, #tpu.memory_space<vmem>>, %arg4: memref<16x1xf32, #tpu.memory_space<vmem>>, %arg5: memref<16x128xf32, #tpu.memory_space<vmem>>) attributes {dimension_semantics = [#tpu.dimension_semantics<parallel>], iteration_bounds = array<i64: 1>, scalar_prefetch = 0 : i64, scratch_operands = 0 : i64, tpu.core_type = #tpu.core_type<tc>, window_params = [{pipeline_mode = #tpu.pipeline_mode<synchronous>, transform_indices = @transform_0, window_bounds = array<i64: 128, 128>}, {transform_indices = @transform_1, window_bounds = array<i64: 8, 128>}, {pipeline_mode = #tpu.pipeline_mode<synchronous>, transform_indices = @transform_2, window_bounds = array<i64: 3, 16, 8>}, {pipeline_mode = #tpu.pipeline_mode<synchronous>, transform_indices = @transform_3, window_bounds = array<i64: 16, 1>}, {transform_indices = @transform_4, window_bounds = array<i64: 16, 128>}]} {
    %c0 = arith.constant 0 : index
    %c0_0 = arith.constant 0 : index
    %0 = vector.load %arg1[%c0, %c0_0] : memref<128x128xf32, #tpu.memory_space<vmem>>, vector<128x128xf32>
    %c0_1 = arith.constant 0 : index
    %c0_2 = arith.constant 0 : index
    %1 = vector.load %arg4[%c0_1, %c0_2] : memref<16x1xf32, #tpu.memory_space<vmem>>, vector<16x1xf32>
    %2 = vector.shape_cast %1 : vector<16x1xf32> to vector<16x1xf32>
    %3 = vector.broadcast %2 : vector<16x1xf32> to vector<16x128xf32>
    %c0_3 = arith.constant 0 : index
    %c0_4 = arith.constant 0 : index
    %4 = vector.load %arg5[%c0_3, %c0_4] : memref<16x128xf32, #tpu.memory_space<vmem>>, vector<16x128xf32>
    tpu.vector_store %arg5[%c0_3, %c0_4], %3 {strides = array<i32>} : memref<16x128xf32, #tpu.memory_space<vmem>>, vector<16x128xf32>,
    %c0_5 = arith.constant 0 : index
    %c0_6 = arith.constant 0 : index
    %5 = vector.load %arg2[%c0_5, %c0_6] : memref<8x128xf32, #tpu.memory_space<vmem>>, vector<8x128xf32>
    %c0_7 = arith.constant 0 : index
    %c0_8 = arith.constant 0 : index
    %6 = vector.load %arg5[%c0_7, %c0_8] : memref<16x128xf32, #tpu.memory_space<vmem>>, vector<16x128xf32>
    %c0_9 = arith.constant 0 : index
    %c0_10 = arith.constant 0 : index
    %c0_11 = arith.constant 0 : index
    %7 = vector.load %arg3[%c0_9, %c0_10, %c0_11] : memref<3x16x8xf32, #tpu.memory_space<vmem>>, vector<1x16x8xf32>
    %8 = vector.shape_cast %7 : vector<1x16x8xf32> to vector<16x8xf32>
    %cst = arith.constant dense<0.000000e+00> : vector<16x128xf32>
    %9 = tpu.matmul %8, %5, %cst {dimension_numbers = #tpu.dot_dimension_numbers<[1], [0], [0], [1], [0, 0, 1, 1], [], []>} : vector<16x8xf32>, vector<8x128xf32>, vector<16x128xf32> -> vector<16x128xf32>
    %10 = arith.addf %6, %9 : vector<16x128xf32>
    %c0_12 = arith.constant 0 : index
    %c0_13 = arith.constant 0 : index
    %11 = vector.load %arg5[%c0_12, %c0_13] : memref<16x128xf32, #tpu.memory_space<vmem>>, vector<16x128xf32>
    tpu.vector_store %arg5[%c0_12, %c0_13], %10 {strides = array<i32>} : memref<16x128xf32, #tpu.memory_space<vmem>>, vector<16x128xf32>,
    %cst_14 = arith.constant dense<0.000000e+00> : vector<8x128xf32>
    %12 = tpu.matmul %5, %0, %cst_14 {dimension_numbers = #tpu.dot_dimension_numbers<[1], [0], [0], [1], [0, 0, 1, 1], [], []>} : vector<8x128xf32>, vector<128x128xf32>, vector<8x128xf32> -> vector<8x128xf32>
    %c0_15 = arith.constant 0 : index
    %c0_16 = arith.constant 0 : index
    %13 = vector.load %arg5[%c0_15, %c0_16] : memref<16x128xf32, #tpu.memory_space<vmem>>, vector<16x128xf32>
    %c1 = arith.constant 1 : index
    %c0_17 = arith.constant 0 : index
    %c0_18 = arith.constant 0 : index
    %14 = vector.load %arg3[%c1, %c0_17, %c0_18] : memref<3x16x8xf32, #tpu.memory_space<vmem>>, vector<1x16x8xf32>
    %15 = vector.shape_cast %14 : vector<1x16x8xf32> to vector<16x8xf32>
    %cst_19 = arith.constant dense<0.000000e+00> : vector<16x128xf32>
    %16 = tpu.matmul %15, %12, %cst_19 {dimension_numbers = #tpu.dot_dimension_numbers<[1], [0], [0], [1], [0, 0, 1, 1], [], []>} : vector<16x8xf32>, vector<8x128xf32>, vector<16x128xf32> -> vector<16x128xf32>
    %17 = arith.addf %13, %16 : vector<16x128xf32>
    %c0_20 = arith.constant 0 : index
    %c0_21 = arith.constant 0 : index
    %18 = vector.load %arg5[%c0_20, %c0_21] : memref<16x128xf32, #tpu.memory_space<vmem>>, vector<16x128xf32>
    tpu.vector_store %arg5[%c0_20, %c0_21], %17 {strides = array<i32>} : memref<16x128xf32, #tpu.memory_space<vmem>>, vector<16x128xf32>,
    %cst_22 = arith.constant dense<0.000000e+00> : vector<8x128xf32>
    %19 = tpu.matmul %12, %0, %cst_22 {dimension_numbers = #tpu.dot_dimension_numbers<[1], [0], [0], [1], [0, 0, 1, 1], [], []>} : vector<8x128xf32>, vector<128x128xf32>, vector<8x128xf32> -> vector<8x128xf32>
    %c0_23 = arith.constant 0 : index
    %c0_24 = arith.constant 0 : index
    %20 = vector.load %arg5[%c0_23, %c0_24] : memref<16x128xf32, #tpu.memory_space<vmem>>, vector<16x128xf32>
    %c2 = arith.constant 2 : index
    %c0_25 = arith.constant 0 : index
    %c0_26 = arith.constant 0 : index
    %21 = vector.load %arg3[%c2, %c0_25, %c0_26] : memref<3x16x8xf32, #tpu.memory_space<vmem>>, vector<1x16x8xf32>
    %22 = vector.shape_cast %21 : vector<1x16x8xf32> to vector<16x8xf32>
    %cst_27 = arith.constant dense<0.000000e+00> : vector<16x128xf32>
    %23 = tpu.matmul %22, %19, %cst_27 {dimension_numbers = #tpu.dot_dimension_numbers<[1], [0], [0], [1], [0, 0, 1, 1], [], []>} : vector<16x8xf32>, vector<8x128xf32>, vector<16x128xf32> -> vector<16x128xf32>
    %24 = arith.addf %20, %23 : vector<16x128xf32>
    %c0_28 = arith.constant 0 : index
    %c0_29 = arith.constant 0 : index
    %25 = vector.load %arg5[%c0_28, %c0_29] : memref<16x128xf32, #tpu.memory_space<vmem>>, vector<16x128xf32>
    tpu.vector_store %arg5[%c0_28, %c0_29], %24 {strides = array<i32>} : memref<16x128xf32, #tpu.memory_space<vmem>>, vector<16x128xf32>,
    return
  }
  func.func @transform_0(%arg0: i32) -> (i32, i32) {
    %c0_i32 = arith.constant 0 : i32
    %c0_i32_0 = arith.constant 0 : i32
    %c0_i32_1 = arith.constant 0 : i32
    return %c0_i32, %c0_i32_0 : i32, i32
  }
  func.func @transform_1(%arg0: i32) -> (i32, i32) {
    %c0_i32 = arith.constant 0 : i32
    %c0_i32_0 = arith.constant 0 : i32
    return %arg0, %c0_i32 : i32, i32
  }
  func.func @transform_2(%arg0: i32) -> (i32, i32, i32) {
    %c0_i32 = arith.constant 0 : i32
    %c0_i32_0 = arith.constant 0 : i32
    %c0_i32_1 = arith.constant 0 : i32
    %c0_i32_2 = arith.constant 0 : i32
    return %c0_i32, %c0_i32_0, %c0_i32_1 : i32, i32, i32
  }
  func.func @transform_3(%arg0: i32) -> (i32, i32) {
    %c0_i32 = arith.constant 0 : i32
    %c0_i32_0 = arith.constant 0 : i32
    %c0_i32_1 = arith.constant 0 : i32
    return %c0_i32, %c0_i32_0 : i32, i32
  }
  func.func @transform_4(%arg0: i32) -> (i32, i32) {
    %c0_i32 = arith.constant 0 : i32
    %c0_i32_0 = arith.constant 0 : i32
    return %arg0, %c0_i32 : i32, i32
  }
}

module attributes {stable_mosaic.version = 11 : i64} {
  func.func @_mixprop_kernel(%arg0: i32, %arg1: memref<128x128xf32, #tpu.memory_space<vmem>>, %arg2: memref<8x128xf32, #tpu.memory_space<vmem>>, %arg3: memref<3x16x8xf32, #tpu.memory_space<vmem>>, %arg4: memref<16x1xf32, #tpu.memory_space<vmem>>, %arg5: memref<16x128xf32, #tpu.memory_space<vmem>>) attributes {dimension_semantics = [#tpu.dimension_semantics<parallel>], iteration_bounds = array<i64: 1>, scalar_prefetch = 0 : i64, scratch_operands = 0 : i64, tpu.core_type = #tpu.core_type<tc>, window_params = [{pipeline_mode = #tpu.pipeline_mode<synchronous>, transform_indices = @transform_0, window_bounds = array<i64: 128, 128>}, {transform_indices = @transform_1, window_bounds = array<i64: 8, 128>}, {pipeline_mode = #tpu.pipeline_mode<synchronous>, transform_indices = @transform_2, window_bounds = array<i64: 3, 16, 8>}, {pipeline_mode = #tpu.pipeline_mode<synchronous>, transform_indices = @transform_3, window_bounds = array<i64: 16, 1>}, {transform_indices = @transform_4, window_bounds = array<i64: 16, 128>}]} {
    %c0 = arith.constant 0 : index
    %c0_0 = arith.constant 0 : index
    %0 = vector.load %arg1[%c0, %c0_0] : memref<128x128xf32, #tpu.memory_space<vmem>>, vector<128x128xf32>
    %c0_1 = arith.constant 0 : index
    %c0_2 = arith.constant 0 : index
    %1 = vector.load %arg4[%c0_1, %c0_2] : memref<16x1xf32, #tpu.memory_space<vmem>>, vector<16x1xf32>
    %2 = vector.shape_cast %1 : vector<16x1xf32> to vector<16x1xf32>
    %3 = vector.broadcast %2 : vector<16x1xf32> to vector<16x128xf32>
    %c0_3 = arith.constant 0 : index
    %c0_4 = arith.constant 0 : index
    %4 = vector.load %arg5[%c0_3, %c0_4] : memref<16x128xf32, #tpu.memory_space<vmem>>, vector<16x128xf32>
    tpu.vector_store %arg5[%c0_3, %c0_4], %3 {strides = array<i32>} : memref<16x128xf32, #tpu.memory_space<vmem>>, vector<16x128xf32>,
    %c0_5 = arith.constant 0 : index
    %c0_6 = arith.constant 0 : index
    %5 = vector.load %arg2[%c0_5, %c0_6] : memref<8x128xf32, #tpu.memory_space<vmem>>, vector<8x128xf32>
    %c0_7 = arith.constant 0 : index
    %c0_8 = arith.constant 0 : index
    %6 = vector.load %arg5[%c0_7, %c0_8] : memref<16x128xf32, #tpu.memory_space<vmem>>, vector<16x128xf32>
    %c0_9 = arith.constant 0 : index
    %c0_10 = arith.constant 0 : index
    %c0_11 = arith.constant 0 : index
    %7 = vector.load %arg3[%c0_9, %c0_10, %c0_11] : memref<3x16x8xf32, #tpu.memory_space<vmem>>, vector<1x16x8xf32>
    %8 = vector.shape_cast %7 : vector<1x16x8xf32> to vector<16x8xf32>
    %cst = arith.constant dense<0.000000e+00> : vector<16x128xf32>
    %9 = tpu.matmul %8, %5, %cst {dimension_numbers = #tpu.dot_dimension_numbers<[1], [0], [0], [1], [0, 0, 1, 1], [], []>} : vector<16x8xf32>, vector<8x128xf32>, vector<16x128xf32> -> vector<16x128xf32>
    %10 = arith.addf %6, %9 : vector<16x128xf32>
    %c0_12 = arith.constant 0 : index
    %c0_13 = arith.constant 0 : index
    %11 = vector.load %arg5[%c0_12, %c0_13] : memref<16x128xf32, #tpu.memory_space<vmem>>, vector<16x128xf32>
    tpu.vector_store %arg5[%c0_12, %c0_13], %10 {strides = array<i32>} : memref<16x128xf32, #tpu.memory_space<vmem>>, vector<16x128xf32>,
    %cst_14 = arith.constant dense<0.000000e+00> : vector<8x128xf32>
    %12 = tpu.matmul %5, %0, %cst_14 {dimension_numbers = #tpu.dot_dimension_numbers<[1], [0], [0], [1], [0, 0, 1, 1], [], []>} : vector<8x128xf32>, vector<128x128xf32>, vector<8x128xf32> -> vector<8x128xf32>
    %c0_15 = arith.constant 0 : index
    %c0_16 = arith.constant 0 : index
    %13 = vector.load %arg5[%c0_15, %c0_16] : memref<16x128xf32, #tpu.memory_space<vmem>>, vector<16x128xf32>
    %c1 = arith.constant 1 : index
    %c0_17 = arith.constant 0 : index
    %c0_18 = arith.constant 0 : index
    %14 = vector.load %arg3[%c1, %c0_17, %c0_18] : memref<3x16x8xf32, #tpu.memory_space<vmem>>, vector<1x16x8xf32>
    %15 = vector.shape_cast %14 : vector<1x16x8xf32> to vector<16x8xf32>
    %cst_19 = arith.constant dense<0.000000e+00> : vector<16x128xf32>
    %16 = tpu.matmul %15, %12, %cst_19 {dimension_numbers = #tpu.dot_dimension_numbers<[1], [0], [0], [1], [0, 0, 1, 1], [], []>} : vector<16x8xf32>, vector<8x128xf32>, vector<16x128xf32> -> vector<16x128xf32>
    %17 = arith.addf %13, %16 : vector<16x128xf32>
    %c0_20 = arith.constant 0 : index
    %c0_21 = arith.constant 0 : index
    %18 = vector.load %arg5[%c0_20, %c0_21] : memref<16x128xf32, #tpu.memory_space<vmem>>, vector<16x128xf32>
    tpu.vector_store %arg5[%c0_20, %c0_21], %17 {strides = array<i32>} : memref<16x128xf32, #tpu.memory_space<vmem>>, vector<16x128xf32>,
    %cst_22 = arith.constant dense<0.000000e+00> : vector<8x128xf32>
    %19 = tpu.matmul %12, %0, %cst_22 {dimension_numbers = #tpu.dot_dimension_numbers<[1], [0], [0], [1], [0, 0, 1, 1], [], []>} : vector<8x128xf32>, vector<128x128xf32>, vector<8x128xf32> -> vector<8x128xf32>
    %c0_23 = arith.constant 0 : index
    %c0_24 = arith.constant 0 : index
    %20 = vector.load %arg5[%c0_23, %c0_24] : memref<16x128xf32, #tpu.memory_space<vmem>>, vector<16x128xf32>
    %c2 = arith.constant 2 : index
    %c0_25 = arith.constant 0 : index
    %c0_26 = arith.constant 0 : index
    %21 = vector.load %arg3[%c2, %c0_25, %c0_26] : memref<3x16x8xf32, #tpu.memory_space<vmem>>, vector<1x16x8xf32>
    %22 = vector.shape_cast %21 : vector<1x16x8xf32> to vector<16x8xf32>
    %cst_27 = arith.constant dense<0.000000e+00> : vector<16x128xf32>
    %23 = tpu.matmul %22, %19, %cst_27 {dimension_numbers = #tpu.dot_dimension_numbers<[1], [0], [0], [1], [0, 0, 1, 1], [], []>} : vector<16x8xf32>, vector<8x128xf32>, vector<16x128xf32> -> vector<16x128xf32>
    %24 = arith.addf %20, %23 : vector<16x128xf32>
    %c0_28 = arith.constant 0 : index
    %c0_29 = arith.constant 0 : index
    %25 = vector.load %arg5[%c0_28, %c0_29] : memref<16x128xf32, #tpu.memory_space<vmem>>, vector<16x128xf32>
    tpu.vector_store %arg5[%c0_28, %c0_29], %24 {strides = array<i32>} : memref<16x128xf32, #tpu.memory_space<vmem>>, vector<16x128xf32>,
    return
  }
  func.func @transform_0(%arg0: i32) -> (i32, i32) {
    %c0_i32 = arith.constant 0 : i32
    %c0_i32_0 = arith.constant 0 : i32
    %c0_i32_1 = arith.constant 0 : i32
    return %c0_i32, %c0_i32_0 : i32, i32
  }
  func.func @transform_1(%arg0: i32) -> (i32, i32) {
    %c0_i32 = arith.constant 0 : i32
    %c0_i32_0 = arith.constant 0 : i32
    return %arg0, %c0_i32 : i32, i32
  }
  func.func @transform_2(%arg0: i32) -> (i32, i32, i32) {
    %c0_i32 = arith.constant 0 : i32
    %c0_i32_0 = arith.constant 0 : i32
    %c0_i32_1 = arith.constant 0 : i32
    %c0_i32_2 = arith.constant 0 : i32
    return %c0_i32, %c0_i32_0, %c0_i32_1 : i32, i32, i32
  }
  func.func @transform_3(%arg0: i32) -> (i32, i32) {
    %c0_i32 = arith.constant 0 : i32
    %c0_i32_0 = arith.constant 0 : i32
    %c0_i32_1 = arith.constant 0 : i32
    return %c0_i32, %c0_i32_0 : i32, i32
  }
  func.func @transform_4(%arg0: i32) -> (i32, i32) {
    %c0_i32 = arith.constant 0 : i32
    %c0_i32_0 = arith.constant 0 : i32
    return %arg0, %c0_i32 : i32, i32
  }
}

</mosaic_0001>

<llo_original>
// kernel: tpu_custom_call.1
$region0: #{tpu_custom_call.1}
  #allocation0 [shape = 'u32[]', space=smem, size = 0x4, offset = 0x4, fixed_abs, tag = 'smem constant byte address 0x4 - core index']
  #allocation1 [shape = 'u32[144,128]{1,0:T(1,128)}', space=vmem, size = 0x12000, scoped, tag = 'internal scratch']
  %s0 = inlined_call_operand.hbm [shape: f32[128,128], index: 0, kind: input, shape index: {}]
  %s1 = inlined_call_operand.hbm [shape: f32[8,128], index: 1, kind: input, shape index: {}]
  %s2 = inlined_call_operand.hbm [shape: f32[3,16,8], index: 2, kind: input, shape index: {}]
  %s3 = inlined_call_operand.hbm [shape: f32[16,1], index: 3, kind: input, shape index: {}]
  %s4 = inlined_call_operand.hbm [shape: f32[16,128], index: 4, kind: output, shape index: {}]
  %s5 = sld [smem:[#allocation0]]
  $region42: #{tpu_custom_call.1} parent=0
    _
  %s7 = ssub.s32 1, %s5
  %s8 = scalar_select 0, %s7, %s5
  $region1: #{tpu_custom_call.1} parent=0
    #allocation2 [shape = 'u8[65536]{0}', space=vmem, size = 0x10000, scoped, tag = 'input window, operand 0, single buffered']
    #allocation3 [shape = 's32[1]{0}', space=sflag, size = 0x4, scoped, tag = 'scoped memory for tpu_custom_call.1']
    #allocation4 [shape = 's32[1]{0}', space=sflag, size = 0x4, scoped, tag = 'scoped memory for tpu_custom_call.1']
    #allocation5 [shape = 'u8[4096]{0}', space=vmem, size = 0x1000, scoped, tag = 'input window, operand 1, single buffered']
    #allocation6 [shape = 's32[1]{0}', space=sflag, size = 0x4, scoped, tag = 'scoped memory for tpu_custom_call.1']
    #allocation7 [shape = 'u8[24576]{0}', space=vmem, size = 0x6000, scoped, tag = 'input window, operand 2, single buffered']
    #allocation8 [shape = 'u8[8192]{0}', space=vmem, size = 0x2000, scoped, tag = 'input window, operand 3, single buffered']
    #allocation9 [shape = 's32[1]{0}', space=sflag, size = 0x4, scoped, tag = 'scoped memory for tpu_custom_call.1']
    #allocation10 [shape = 'u8[8192]{0}', space=vmem, size = 0x2000, scoped, tag = 'output window, operand 0, single buffered']
    %9 = vsyncpa [#allocation3], 0
    %10 = vsyncpa [#allocation6], 0
    %11 = vsyncpa [#allocation9], 0
    %12 = vsyncpa [#allocation4], 0
    // Predicated region
    $region2: #{tpu_custom_call.1} parent=1 // pred_check
      _
    $region3: #{tpu_custom_call.1} parent=1 // pred_check_branch
      %14 = sbr.rel (0) target = $region5
    $region4: #{tpu_custom_call.1} parent=1 // pred_region
      %s16 = ssub.s32 2048, 2048
      %17 = vsyncadd [#allocation3], %s16
      %s18 = sshll.u32 [#allocation2], 4
      %s19 = int_to_ptr.vmem [resolvable:$true] %s18
      %24 = dma.hbm_to_vmem [thread:$0]  %s0, 2048, %s19, [#allocation3], 128, 128, 8
    $region5: #{tpu_custom_call.1} parent=1 // pred_fallthru
      _
    // Predicated region
    $region6: #{tpu_custom_call.1} parent=1 // pred_check
      _
    $region7: #{tpu_custom_call.1} parent=1 // pred_check_branch
      %26 = sbr.rel (0) target = $region9
    $region8: #{tpu_custom_call.1} parent=1 // pred_region
      %s28 = ssub.s32 128, 128
      %29 = vsyncadd [#allocation6], %s28
      %s31 = sshll.u32 [#allocation5], 4
      %s32 = int_to_ptr.vmem [resolvable:$true] %s31
      %34 = dma.hbm_to_vmem [thread:$0]  %s1, 128, %s32, [#allocation6]
    $region9: #{tpu_custom_call.1} parent=1 // pred_fallthru
      _
    // Predicated region
    $region10: #{tpu_custom_call.1} parent=1 // pred_check
      _
    $region11: #{tpu_custom_call.1} parent=1 // pred_check_branch
      %36 = sbr.rel (0) target = $region13
    $region12: #{tpu_custom_call.1} parent=1 // pred_region
      %s38 = ssub.s32 768, 768
      %39 = vsyncadd [#allocation6], %s38
      %s40 = sshll.u32 [#allocation7], 4
      %s41 = int_to_ptr.vmem [resolvable:$true] %s40
      %46 = dma.hbm_to_vmem [thread:$0]  %s2, 768, %s41, [#allocation6], 128, 128, 8
    $region13: #{tpu_custom_call.1} parent=1 // pred_fallthru
      _
    // Predicated region
    $region14: #{tpu_custom_call.1} parent=1 // pred_check
      _
    $region15: #{tpu_custom_call.1} parent=1 // pred_check_branch
      %48 = sbr.rel (0) target = $region17
    $region16: #{tpu_custom_call.1} parent=1 // pred_region
      %s50 = ssub.s32 256, 256
      %51 = vsyncadd [#allocation9], %s50
      %s52 = sshll.u32 [#allocation8], 4
      %s53 = int_to_ptr.vmem [resolvable:$true] %s52
      %58 = dma.hbm_to_vmem [thread:$0]  %s3, 256, %s53, [#allocation9], 128, 128, 8
    $region17: #{tpu_custom_call.1} parent=1 // pred_fallthru
      _
    // Predicated region
    $region18: #{tpu_custom_call.1} parent=1 // pred_check
      _
    $region19: #{tpu_custom_call.1} parent=1 // pred_check_branch
      %60 = sbr.rel (0) target = $region21
    $region20: #{tpu_custom_call.1} parent=1 // pred_region
      %61 = dma.done [#allocation3], 2048
    $region21: #{tpu_custom_call.1} parent=1 // pred_fallthru
      _
    // Predicated region
    $region22: #{tpu_custom_call.1} parent=1 // pred_check
      _
    $region23: #{tpu_custom_call.1} parent=1 // pred_check_branch
      %63 = sbr.rel (0) target = $region25
    $region24: #{tpu_custom_call.1} parent=1 // pred_region
      %64 = dma.done [#allocation6], 128
    $region25: #{tpu_custom_call.1} parent=1 // pred_fallthru
      _
    // Predicated region
    $region26: #{tpu_custom_call.1} parent=1 // pred_check
      _
    $region27: #{tpu_custom_call.1} parent=1 // pred_check_branch
      %66 = sbr.rel (0) target = $region29
    $region28: #{tpu_custom_call.1} parent=1 // pred_region
      %67 = dma.done [#allocation6], 768
    $region29: #{tpu_custom_call.1} parent=1 // pred_fallthru
      _
    // Predicated region
    $region30: #{tpu_custom_call.1} parent=1 // pred_check
      _
    $region31: #{tpu_custom_call.1} parent=1 // pred_check_branch
      %69 = sbr.rel (0) target = $region33
    $region32: #{tpu_custom_call.1} parent=1 // pred_region
      %70 = dma.done [#allocation9], 256
    $region33: #{tpu_custom_call.1} parent=1 // pred_fallthru
      _
    %v71 = vld [vmem:[#allocation2] sm:$0xff]
    %v72 = vld [vmem:[#allocation2 + $0x8] sm:$0xff]
    %v73 = vld [vmem:[#allocation2 + $0x10] sm:$0xff]
    %v74 = vld [vmem:[#allocation2 + $0x18] sm:$0xff]
    %v75 = vld [vmem:[#allocation2 + $0x20] sm:$0xff]
    %v76 = vld [vmem:[#allocation2 + $0x28] sm:$0xff]
    %v77 = vld [vmem:[#allocation2 + $0x30] sm:$0xff]
    %v78 = vld [vmem:[#allocation2 + $0x38] sm:$0xff]
    %v79 = vld [vmem:[#allocation2 + $0x40] sm:$0xff]
    %v80 = vld [vmem:[#allocation2 + $0x48] sm:$0xff]
    %v81 = vld [vmem:[#allocation2 + $0x50] sm:$0xff]
    %v82 = vld [vmem:[#allocation2 + $0x58] sm:$0xff]
    %v83 = vld [vmem:[#allocation2 + $0x60] sm:$0xff]
    %v84 = vld [vmem:[#allocation2 + $0x68] sm:$0xff]
    %v85 = vld [vmem:[#allocation2 + $0x70] sm:$0xff]
    %v86 = vld [vmem:[#allocation2 + $0x78] sm:$0xff]
    %v87 = vld [vmem:[#allocation8] sm:$0xff]
    %v88 = vld [vmem:[#allocation8 + $0x8] sm:$0xff]
    %90 = vset.pattern.permute.xlu0 0
    %91 = vperm.xlu0 %90, %v87
    %v92 = vpop.permute.xlu0 %91
    %95 = vset.pattern.permute.xlu0 0
    %96 = vperm.xlu0 %95, %v88
    %v97 = vpop.permute.xlu0 %96
    %99 = vst [vmem:[#allocation10] sm:$0xff] %v92
    %100 = vst [vmem:[#allocation10 + $0x8] sm:$0xff] %v97
    %v101 = vld [vmem:[#allocation5] sm:$0xff]
    %v102 = vld [vmem:[#allocation10] sm:$0xff]
    %v103 = vld [vmem:[#allocation10 + $0x8] sm:$0xff]
    %v104 = vld [vmem:[#allocation7] sm:$0xff]
    %v105 = vld [vmem:[#allocation7 + $0x8] sm:$0xff]
    %vm106 = vcmask 64512
    %v108 = vsel %vm106, %v104, 0
    %v111 = vsel %vm106, %v105, 0
    %113 = vmatprep.subr.mxu0 0.0
    %114 = vmatpush1.msra.mxu0 %v101
    %115 = vmatprep.subr.mxu0 0.0
    %116 = vmatpush1.msra.mxu0 0.0
    %117 = vmatprep.subr.mxu0 0.0
    %118 = vmatpush1.msra.mxu0 0.0
    %119 = vmatprep.subr.mxu0 0.0
    %120 = vmatpush1.msra.mxu0 0.0
    %121 = vmatprep.subr.mxu0 0.0
    %122 = vmatpush1.msra.mxu0 0.0
    %123 = vmatprep.subr.mxu0 0.0
    %124 = vmatpush1.msra.mxu0 0.0
    %125 = vmatprep.subr.mxu0 0.0
    %126 = vmatpush1.msra.mxu0 0.0
    %127 = vmatprep.subr.mxu0 0.0
    %128 = vmatpush1.msra.mxu0 0.0
    %129 = vmatprep.subr.mxu0 0.0
    %130 = vmatpush1.msra.mxu0 0.0
    %131 = vmatprep.subr.mxu0 0.0
    %132 = vmatpush1.msra.mxu0 0.0
    %133 = vmatprep.subr.mxu0 0.0
    %134 = vmatpush1.msra.mxu0 0.0
    %135 = vmatprep.subr.mxu0 0.0
    %136 = vmatpush1.msra.mxu0 0.0
    %137 = vmatprep.subr.mxu0 0.0
    %138 = vmatpush1.msra.mxu0 0.0
    %139 = vmatprep.subr.mxu0 0.0
    %140 = vmatpush1.msra.mxu0 0.0
    %141 = vmatprep.subr.mxu0 0.0
    %142 = vmatpush1.msra.mxu0 0.0
    %143 = vmatprep.subr.mxu0 0.0
    %144 = vmatpush1.msra.mxu0 0.0
    %145 = vmatprep.subr.mxu0 0.0
    %146 = vmatpush1.msra.mxu0 0.0
    %147 = vmatprep.subr.mxu0 0.0
    %148 = vmatpush1.msra.mxu0 0.0
    %149 = vmatprep.subr.mxu0 0.0
    %150 = vmatpush1.msra.mxu0 0.0
    %151 = vmatprep.subr.mxu0 0.0
    %152 = vmatpush1.msra.mxu0 0.0
    %153 = vmatprep.subr.mxu0 0.0
    %154 = vmatpush1.msra.mxu0 0.0
    %155 = vmatprep.subr.mxu0 0.0
    %156 = vmatpush1.msra.mxu0 0.0
    %157 = vmatprep.subr.mxu0 0.0
    %158 = vmatpush1.msra.mxu0 0.0
    %159 = vmatprep.subr.mxu0 0.0
    %160 = vmatpush1.msra.mxu0 0.0
    %161 = vmatprep.subr.mxu0 0.0
    %162 = vmatpush1.msra.mxu0 0.0
    %163 = vmatprep.subr.mxu0 0.0
    %164 = vmatpush1.msra.mxu0 0.0
    %165 = vmatprep.subr.mxu0 0.0
    %166 = vmatpush1.msra.mxu0 0.0
    %167 = vmatprep.subr.mxu0 0.0
    %168 = vmatpush1.msra.mxu0 0.0
    %169 = vmatprep.subr.mxu0 0.0
    %170 = vmatpush1.msra.mxu0 0.0
    %171 = vmatprep.subr.mxu0 0.0
    %172 = vmatpush1.msra.mxu0 0.0
    %173 = vmatprep.subr.mxu0 0.0
    %174 = vmatpush1.msra.mxu0 0.0
    %175 = vmatprep.subr.mxu0 0.0
    %176 = vmatpush1.msra.mxu0 0.0
    %177 = vmatprep.mubr.f32.mxu0 0.0
    %178 = vmatmul.mubr.f32.gmra.mrb[0].mxu0 %v108
    %v179 = vpop.f32.mrb[0].mxu0
    %v180 = vadd.f32 0.0, %v179
    %v181 = vpop.f32.mrb[0].mxu0
    %182 = vmatprep.mubr.f32.mxu0 0.0
    %183 = vmatmul.mubr.f32.gmra.mrb[0].mxu0 %v111
    %v184 = vpop.f32.mrb[0].mxu0
    %v185 = vadd.f32 0.0, %v184
    %v186 = vpop.f32.mrb[0].mxu0
    %187 = vdwg.mxu0
    %v188 = vadd.f32 %v102, %v180
    %v189 = vadd.f32 %v103, %v185
    %190 = vst [vmem:[#allocation10] sm:$0xff] %v188
    %191 = vst [vmem:[#allocation10 + $0x8] sm:$0xff] %v189
    %192 = vmatprep.subr.mxu0 0.0
    %193 = vmatpush1.msra.mxu0 %v71
    %194 = vmatprep.subr.mxu0 0.0
    %195 = vmatpush1.msra.mxu0 %v72
    %196 = vmatprep.subr.mxu0 0.0
    %197 = vmatpush1.msra.mxu0 %v73
    %198 = vmatprep.subr.mxu0 0.0
    %199 = vmatpush1.msra.mxu0 %v74
    %200 = vmatprep.subr.mxu0 0.0
    %201 = vmatpush1.msra.mxu0 %v75
    %202 = vmatprep.subr.mxu0 0.0
    %203 = vmatpush1.msra.mxu0 %v76
    %204 = vmatprep.subr.mxu0 0.0
    %205 = vmatpush1.msra.mxu0 %v77
    %206 = vmatprep.subr.mxu0 0.0
    %207 = vmatpush1.msra.mxu0 %v78
    %208 = vmatprep.subr.mxu0 0.0
    %209 = vmatpush1.msra.mxu0 %v79
    %210 = vmatprep.subr.mxu0 0.0
    %211 = vmatpush1.msra.mxu0 %v80
    %212 = vmatprep.subr.mxu0 0.0
    %213 = vmatpush1.msra.mxu0 %v81
    %214 = vmatprep.subr.mxu0 0.0
    %215 = vmatpush1.msra.mxu0 %v82
    %216 = vmatprep.subr.mxu0 0.0
    %217 = vmatpush1.msra.mxu0 %v83
    %218 = vmatprep.subr.mxu0 0.0
    %219 = vmatpush1.msra.mxu0 %v84
    %220 = vmatprep.subr.mxu0 0.0
    %221 = vmatpush1.msra.mxu0 %v85
    %222 = vmatprep.subr.mxu0 0.0
    %223 = vmatpush1.msra.mxu0 %v86
    %224 = vmatprep.subr.mxu0 0.0
    %225 = vmatpush1.msra.mxu0 0.0
    %226 = vmatprep.subr.mxu0 0.0
    %227 = vmatpush1.msra.mxu0 0.0
    %228 = vmatprep.subr.mxu0 0.0
    %229 = vmatpush1.msra.mxu0 0.0
    %230 = vmatprep.subr.mxu0 0.0
    %231 = vmatpush1.msra.mxu0 0.0
    %232 = vmatprep.subr.mxu0 0.0
    %233 = vmatpush1.msra.mxu0 0.0
    %234 = vmatprep.subr.mxu0 0.0
    %235 = vmatpush1.msra.mxu0 0.0
    %236 = vmatprep.subr.mxu0 0.0
    %237 = vmatpush1.msra.mxu0 0.0
    %238 = vmatprep.subr.mxu0 0.0
    %239 = vmatpush1.msra.mxu0 0.0
    %240 = vmatprep.subr.mxu0 0.0
    %241 = vmatpush1.msra.mxu0 0.0
    %242 = vmatprep.subr.mxu0 0.0
    %243 = vmatpush1.msra.mxu0 0.0
    %244 = vmatprep.subr.mxu0 0.0
    %245 = vmatpush1.msra.mxu0 0.0
    %246 = vmatprep.subr.mxu0 0.0
    %247 = vmatpush1.msra.mxu0 0.0
    %248 = vmatprep.subr.mxu0 0.0
    %249 = vmatpush1.msra.mxu0 0.0
    %250 = vmatprep.subr.mxu0 0.0
    %251 = vmatpush1.msra.mxu0 0.0
    %252 = vmatprep.subr.mxu0 0.0
    %253 = vmatpush1.msra.mxu0 0.0
    %254 = vmatprep.subr.mxu0 0.0
    %255 = vmatpush1.msra.mxu0 0.0
    %256 = vmatprep.mubr.f32.mxu0 0.0
    %257 = vmatmul.mubr.f32.gmra.mrb[0].mxu0 %v101
    %v258 = vpop.f32.mrb[0].mxu0
    %v259 = vadd.f32 0.0, %v258
    %v260 = vpop.f32.mrb[0].mxu0
    %261 = vdwg.mxu0
    %v262 = vld [vmem:[#allocation10] sm:$0xff]
    %v263 = vld [vmem:[#allocation10 + $0x8] sm:$0xff]
    %s264 = scalar_lea.vmem [#allocation7], 16
    %v265 = vld [vmem:[%s264] sm:$0xff]
    %v266 = vld [vmem:[%s264 + $0x8] sm:$0xff]
    %v268 = vsel %vm106, %v265, 0
    %v271 = vsel %vm106, %v266, 0
    %273 = vmatprep.subr.mxu0 0.0
    %274 = vmatpush1.msra.mxu0 %v259
    %275 = vmatprep.subr.mxu0 0.0
    %276 = vmatpush1.msra.mxu0 0.0
    %277 = vmatprep.subr.mxu0 0.0
    %278 = vmatpush1.msra.mxu0 0.0
    %279 = vmatprep.subr.mxu0 0.0
    %280 = vmatpush1.msra.mxu0 0.0
    %281 = vmatprep.subr.mxu0 0.0
    %282 = vmatpush1.msra.mxu0 0.0
    %283 = vmatprep.subr.mxu0 0.0
    %284 = vmatpush1.msra.mxu0 0.0
    %285 = vmatprep.subr.mxu0 0.0
    %286 = vmatpush1.msra.mxu0 0.0
    %287 = vmatprep.subr.mxu0 0.0
    %288 = vmatpush1.msra.mxu0 0.0
    %289 = vmatprep.subr.mxu0 0.0
    %290 = vmatpush1.msra.mxu0 0.0
    %291 = vmatprep.subr.mxu0 0.0
    %292 = vmatpush1.msra.mxu0 0.0
    %293 = vmatprep.subr.mxu0 0.0
    %294 = vmatpush1.msra.mxu0 0.0
    %295 = vmatprep.subr.mxu0 0.0
    %296 = vmatpush1.msra.mxu0 0.0
    %297 = vmatprep.subr.mxu0 0.0
    %298 = vmatpush1.msra.mxu0 0.0
    %299 = vmatprep.subr.mxu0 0.0
    %300 = vmatpush1.msra.mxu0 0.0
    %301 = vmatprep.subr.mxu0 0.0
    %302 = vmatpush1.msra.mxu0 0.0
    %303 = vmatprep.subr.mxu0 0.0
    %304 = vmatpush1.msra.mxu0 0.0
    %305 = vmatprep.subr.mxu0 0.0
    %306 = vmatpush1.msra.mxu0 0.0
    %307 = vmatprep.subr.mxu0 0.0
    %308 = vmatpush1.msra.mxu0 0.0
    %309 = vmatprep.subr.mxu0 0.0
    %310 = vmatpush1.msra.mxu0 0.0
    %311 = vmatprep.subr.mxu0 0.0
    %312 = vmatpush1.msra.mxu0 0.0
    %313 = vmatprep.subr.mxu0 0.0
    %314 = vmatpush1.msra.mxu0 0.0
    %315 = vmatprep.subr.mxu0 0.0
    %316 = vmatpush1.msra.mxu0 0.0
    %317 = vmatprep.subr.mxu0 0.0
    %318 = vmatpush1.msra.mxu0 0.0
    %319 = vmatprep.subr.mxu0 0.0
    %320 = vmatpush1.msra.mxu0 0.0
    %321 = vmatprep.subr.mxu0 0.0
    %322 = vmatpush1.msra.mxu0 0.0
    %323 = vmatprep.subr.mxu0 0.0
    %324 = vmatpush1.msra.mxu0 0.0
    %325 = vmatprep.subr.mxu0 0.0
    %326 = vmatpush1.msra.mxu0 0.0
    %327 = vmatprep.subr.mxu0 0.0
    %328 = vmatpush1.msra.mxu0 0.0
    %329 = vmatprep.subr.mxu0 0.0
    %330 = vmatpush1.msra.mxu0 0.0
    %331 = vmatprep.subr.mxu0 0.0
    %332 = vmatpush1.msra.mxu0 0.0
    %333 = vmatprep.subr.mxu0 0.0
    %334 = vmatpush1.msra.mxu0 0.0
    %335 = vmatprep.subr.mxu0 0.0
    %336 = vmatpush1.msra.mxu0 0.0
    %337 = vmatprep.mubr.f32.mxu0 0.0
    %338 = vmatmul.mubr.f32.gmra.mrb[0].mxu0 %v268
    %v339 = vpop.f32.mrb[0].mxu0
    %v340 = vadd.f32 0.0, %v339
    %v341 = vpop.f32.mrb[0].mxu0
    %342 = vmatprep.mubr.f32.mxu0 0.0
    %343 = vmatmul.mubr.f32.gmra.mrb[0].mxu0 %v271
    %v344 = vpop.f32.mrb[0].mxu0
    %v345 = vadd.f32 0.0, %v344
    %v346 = vpop.f32.mrb[0].mxu0
    %347 = vdwg.mxu0
    %v348 = vadd.f32 %v262, %v340
    %v349 = vadd.f32 %v263, %v345
    %350 = vst [vmem:[#allocation10] sm:$0xff] %v348
    %351 = vst [vmem:[#allocation10 + $0x8] sm:$0xff] %v349
    %352 = vmatprep.subr.mxu0 0.0
    %353 = vmatpush1.msra.mxu0 %v71
    %354 = vmatprep.subr.mxu0 0.0
    %355 = vmatpush1.msra.mxu0 %v72
    %356 = vmatprep.subr.mxu0 0.0
    %357 = vmatpush1.msra.mxu0 %v73
    %358 = vmatprep.subr.mxu0 0.0
    %359 = vmatpush1.msra.mxu0 %v74
    %360 = vmatprep.subr.mxu0 0.0
    %361 = vmatpush1.msra.mxu0 %v75
    %362 = vmatprep.subr.mxu0 0.0
    %363 = vmatpush1.msra.mxu0 %v76
    %364 = vmatprep.subr.mxu0 0.0
    %365 = vmatpush1.msra.mxu0 %v77
    %366 = vmatprep.subr.mxu0 0.0
    %367 = vmatpush1.msra.mxu0 %v78
    %368 = vmatprep.subr.mxu0 0.0
    %369 = vmatpush1.msra.mxu0 %v79
    %370 = vmatprep.subr.mxu0 0.0
    %371 = vmatpush1.msra.mxu0 %v80
    %372 = vmatprep.subr.mxu0 0.0
    %373 = vmatpush1.msra.mxu0 %v81
    %374 = vmatprep.subr.mxu0 0.0
    %375 = vmatpush1.msra.mxu0 %v82
    %376 = vmatprep.subr.mxu0 0.0
    %377 = vmatpush1.msra.mxu0 %v83
    %378 = vmatprep.subr.mxu0 0.0
    %379 = vmatpush1.msra.mxu0 %v84
    %380 = vmatprep.subr.mxu0 0.0
    %381 = vmatpush1.msra.mxu0 %v85
    %382 = vmatprep.subr.mxu0 0.0
    %383 = vmatpush1.msra.mxu0 %v86
    %384 = vmatprep.subr.mxu0 0.0
    %385 = vmatpush1.msra.mxu0 0.0
    %386 = vmatprep.subr.mxu0 0.0
    %387 = vmatpush1.msra.mxu0 0.0
    %388 = vmatprep.subr.mxu0 0.0
    %389 = vmatpush1.msra.mxu0 0.0
    %390 = vmatprep.subr.mxu0 0.0
    %391 = vmatpush1.msra.mxu0 0.0
    %392 = vmatprep.subr.mxu0 0.0
    %393 = vmatpush1.msra.mxu0 0.0
    %394 = vmatprep.subr.mxu0 0.0
    %395 = vmatpush1.msra.mxu0 0.0
    %396 = vmatprep.subr.mxu0 0.0
    %397 = vmatpush1.msra.mxu0 0.0
    %398 = vmatprep.subr.mxu0 0.0
    %399 = vmatpush1.msra.mxu0 0.0
    %400 = vmatprep.subr.mxu0 0.0
    %401 = vmatpush1.msra.mxu0 0.0
    %402 = vmatprep.subr.mxu0 0.0
    %403 = vmatpush1.msra.mxu0 0.0
    %404 = vmatprep.subr.mxu0 0.0
    %405 = vmatpush1.msra.mxu0 0.0
    %406 = vmatprep.subr.mxu0 0.0
    %407 = vmatpush1.msra.mxu0 0.0
    %408 = vmatprep.subr.mxu0 0.0
    %409 = vmatpush1.msra.mxu0 0.0
    %410 = vmatprep.subr.mxu0 0.0
    %411 = vmatpush1.msra.mxu0 0.0
    %412 = vmatprep.subr.mxu0 0.0
    %413 = vmatpush1.msra.mxu0 0.0
    %414 = vmatprep.subr.mxu0 0.0
    %415 = vmatpush1.msra.mxu0 0.0
    %416 = vmatprep.mubr.f32.mxu0 0.0
    %417 = vmatmul.mubr.f32.gmra.mrb[0].mxu0 %v259
    %v418 = vpop.f32.mrb[0].mxu0
    %v419 = vadd.f32 0.0, %v418
    %v420 = vpop.f32.mrb[0].mxu0
    %421 = vdwg.mxu0
    %v422 = vld [vmem:[#allocation10] sm:$0xff]
    %v423 = vld [vmem:[#allocation10 + $0x8] sm:$0xff]
    %s424 = scalar_lea.vmem [#allocation7], 32
    %v425 = vld [vmem:[%s424] sm:$0xff]
    %v426 = vld [vmem:[%s424 + $0x8] sm:$0xff]
    %v428 = vsel %vm106, %v425, 0
    %v431 = vsel %vm106, %v426, 0
    %433 = vmatprep.subr.mxu0 0.0
    %434 = vmatpush1.msra.mxu0 %v419
    %435 = vmatprep.subr.mxu0 0.0
    %436 = vmatpush1.msra.mxu0 0.0
    %437 = vmatprep.subr.mxu0 0.0
    %438 = vmatpush1.msra.mxu0 0.0
    %439 = vmatprep.subr.mxu0 0.0
    %440 = vmatpush1.msra.mxu0 0.0
    %441 = vmatprep.subr.mxu0 0.0
    %442 = vmatpush1.msra.mxu0 0.0
    %443 = vmatprep.subr.mxu0 0.0
    %444 = vmatpush1.msra.mxu0 0.0
    %445 = vmatprep.subr.mxu0 0.0
    %446 = vmatpush1.msra.mxu0 0.0
    %447 = vmatprep.subr.mxu0 0.0
    %448 = vmatpush1.msra.mxu0 0.0
    %449 = vmatprep.subr.mxu0 0.0
    %450 = vmatpush1.msra.mxu0 0.0
    %451 = vmatprep.subr.mxu0 0.0
    %452 = vmatpush1.msra.mxu0 0.0
    %453 = vmatprep.subr.mxu0 0.0
    %454 = vmatpush1.msra.mxu0 0.0
    %455 = vmatprep.subr.mxu0 0.0
    %456 = vmatpush1.msra.mxu0 0.0
    %457 = vmatprep.subr.mxu0 0.0
    %458 = vmatpush1.msra.mxu0 0.0
    %459 = vmatprep.subr.mxu0 0.0
    %460 = vmatpush1.msra.mxu0 0.0
    %461 = vmatprep.subr.mxu0 0.0
    %462 = vmatpush1.msra.mxu0 0.0
    %463 = vmatprep.subr.mxu0 0.0
    %464 = vmatpush1.msra.mxu0 0.0
    %465 = vmatprep.subr.mxu0 0.0
    %466 = vmatpush1.msra.mxu0 0.0
    %467 = vmatprep.subr.mxu0 0.0
    %468 = vmatpush1.msra.mxu0 0.0
    %469 = vmatprep.subr.mxu0 0.0
    %470 = vmatpush1.msra.mxu0 0.0
    %471 = vmatprep.subr.mxu0 0.0
    %472 = vmatpush1.msra.mxu0 0.0
    %473 = vmatprep.subr.mxu0 0.0
    %474 = vmatpush1.msra.mxu0 0.0
    %475 = vmatprep.subr.mxu0 0.0
    %476 = vmatpush1.msra.mxu0 0.0
    %477 = vmatprep.subr.mxu0 0.0
    %478 = vmatpush1.msra.mxu0 0.0
    %479 = vmatprep.subr.mxu0 0.0
    %480 = vmatpush1.msra.mxu0 0.0
    %481 = vmatprep.subr.mxu0 0.0
    %482 = vmatpush1.msra.mxu0 0.0
    %483 = vmatprep.subr.mxu0 0.0
    %484 = vmatpush1.msra.mxu0 0.0
    %485 = vmatprep.subr.mxu0 0.0
    %486 = vmatpush1.msra.mxu0 0.0
    %487 = vmatprep.subr.mxu0 0.0
    %488 = vmatpush1.msra.mxu0 0.0
    %489 = vmatprep.subr.mxu0 0.0
    %490 = vmatpush1.msra.mxu0 0.0
    %491 = vmatprep.subr.mxu0 0.0
    %492 = vmatpush1.msra.mxu0 0.0
    %493 = vmatprep.subr.mxu0 0.0
    %494 = vmatpush1.msra.mxu0 0.0
    %495 = vmatprep.subr.mxu0 0.0
    %496 = vmatpush1.msra.mxu0 0.0
    %497 = vmatprep.mubr.f32.mxu0 0.0
    %498 = vmatmul.mubr.f32.gmra.mrb[0].mxu0 %v428
    %v499 = vpop.f32.mrb[0].mxu0
    %v500 = vadd.f32 0.0, %v499
    %v501 = vpop.f32.mrb[0].mxu0
    %502 = vmatprep.mubr.f32.mxu0 0.0
    %503 = vmatmul.mubr.f32.gmra.mrb[0].mxu0 %v431
    %v504 = vpop.f32.mrb[0].mxu0
    %v505 = vadd.f32 0.0, %v504
    %v506 = vpop.f32.mrb[0].mxu0
    %507 = vdwg.mxu0
    %v508 = vadd.f32 %v422, %v500
    %v509 = vadd.f32 %v423, %v505
    %510 = vst [vmem:[#allocation10] sm:$0xff] %v508
    %511 = vst [vmem:[#allocation10 + $0x8] sm:$0xff] %v509
    // Predicated region
    $region34: #{tpu_custom_call.1} parent=1 // pred_check
      _
    $region35: #{tpu_custom_call.1} parent=1 // pred_check_branch
      %513 = sbr.rel (0) target = $region37
    $region36: #{tpu_custom_call.1} parent=1 // pred_region
      %s515 = ssub.s32 256, 256
      %516 = vsyncadd [#allocation4], %s515
      %s517 = sshll.u32 [#allocation10], 4
      %s518 = int_to_ptr.vmem [resolvable:$true] %s517
      %523 = dma.vmem_to_hbm [thread:$0]  %s518, 256, %s4, [#allocation4], 128, 128, 8
    $region37: #{tpu_custom_call.1} parent=1 // pred_fallthru
      _
    // Predicated region
    $region38: #{tpu_custom_call.1} parent=1 // pred_check
      _
    $region39: #{tpu_custom_call.1} parent=1 // pred_check_branch
      %525 = sbr.rel (0) target = $region41
    $region40: #{tpu_custom_call.1} parent=1 // pred_region
      %526 = dma.done [#allocation4], 256
    $region41: #{tpu_custom_call.1} parent=1 // pred_fallthru
      _
    %527 = vsyncpa [#allocation3], 1
    %528 = vsyncpa [#allocation6], 1
    %529 = vsyncpa [#allocation9], 1
    %530 = vsyncpa [#allocation4], 1

// kernel: tpu_custom_call.1
$region0: #{tpu_custom_call.1}
  #allocation0 [shape = 'u32[]', space=smem, size = 0x4, offset = 0x4, fixed_abs, tag = 'smem constant byte address 0x4 - core index']
  #allocation1 [shape = 'u32[144,128]{1,0:T(1,128)}', space=vmem, size = 0x12000, scoped, tag = 'internal scratch']
  %s0 = inlined_call_operand.hbm [shape: f32[128,128], index: 0, kind: input, shape index: {}]
  %s1 = inlined_call_operand.hbm [shape: f32[8,128], index: 1, kind: input, shape index: {}]
  %s2 = inlined_call_operand.hbm [shape: f32[3,16,8], index: 2, kind: input, shape index: {}]
  %s3 = inlined_call_operand.hbm [shape: f32[16,1], index: 3, kind: input, shape index: {}]
  %s4 = inlined_call_operand.hbm [shape: f32[16,128], index: 4, kind: output, shape index: {}]
  %s5 = sld [smem:[#allocation0]]
  $region42: #{tpu_custom_call.1} parent=0
    _
  %s7 = ssub.s32 1, %s5
  %s8 = scalar_select 0, %s7, %s5
  $region1: #{tpu_custom_call.1} parent=0
    #allocation2 [shape = 'u8[65536]{0}', space=vmem, size = 0x10000, scoped, tag = 'input window, operand 0, single buffered']
    #allocation3 [shape = 's32[1]{0}', space=sflag, size = 0x4, scoped, tag = 'scoped memory for tpu_custom_call.1']
    #allocation4 [shape = 's32[1]{0}', space=sflag, size = 0x4, scoped, tag = 'scoped memory for tpu_custom_call.1']
    #allocation5 [shape = 'u8[4096]{0}', space=vmem, size = 0x1000, scoped, tag = 'input window, operand 1, single buffered']
    #allocation6 [shape = 's32[1]{0}', space=sflag, size = 0x4, scoped, tag = 'scoped memory for tpu_custom_call.1']
    #allocation7 [shape = 'u8[24576]{0}', space=vmem, size = 0x6000, scoped, tag = 'input window, operand 2, single buffered']
    #allocation8 [shape = 'u8[8192]{0}', space=vmem, size = 0x2000, scoped, tag = 'input window, operand 3, single buffered']
    #allocation9 [shape = 's32[1]{0}', space=sflag, size = 0x4, scoped, tag = 'scoped memory for tpu_custom_call.1']
    #allocation10 [shape = 'u8[8192]{0}', space=vmem, size = 0x2000, scoped, tag = 'output window, operand 0, single buffered']
    %9 = vsyncpa [#allocation3], 0
    %10 = vsyncpa [#allocation6], 0
    %11 = vsyncpa [#allocation9], 0
    %12 = vsyncpa [#allocation4], 0
    // Predicated region
    $region2: #{tpu_custom_call.1} parent=1 // pred_check
      _
    $region3: #{tpu_custom_call.1} parent=1 // pred_check_branch
      %14 = sbr.rel (0) target = $region5
    $region4: #{tpu_custom_call.1} parent=1 // pred_region
      %s16 = ssub.s32 2048, 2048
      %17 = vsyncadd [#allocation3], %s16
      %s18 = sshll.u32 [#allocation2], 4
      %s19 = int_to_ptr.vmem [resolvable:$true] %s18
      %24 = dma.hbm_to_vmem [thread:$0]  %s0, 2048, %s19, [#allocation3], 128, 128, 8
    $region5: #{tpu_custom_call.1} parent=1 // pred_fallthru
      _
    // Predicated region
    $region6: #{tpu_custom_call.1} parent=1 // pred_check
      _
    $region7: #{tpu_custom_call.1} parent=1 // pred_check_branch
      %26 = sbr.rel (0) target = $region9
    $region8: #{tpu_custom_call.1} parent=1 // pred_region
      %s28 = ssub.s32 128, 128
      %29 = vsyncadd [#allocation6], %s28
      %s31 = sshll.u32 [#allocation5], 4
      %s32 = int_to_ptr.vmem [resolvable:$true] %s31
      %34 = dma.hbm_to_vmem [thread:$0]  %s1, 128, %s32, [#allocation6]
    $region9: #{tpu_custom_call.1} parent=1 // pred_fallthru
      _
    // Predicated region
    $region10: #{tpu_custom_call.1} parent=1 // pred_check
      _
    $region11: #{tpu_custom_call.1} parent=1 // pred_check_branch
      %36 = sbr.rel (0) target = $region13
    $region12: #{tpu_custom_call.1} parent=1 // pred_region
      %s38 = ssub.s32 768, 768
      %39 = vsyncadd [#allocation6], %s38
      %s40 = sshll.u32 [#allocation7], 4
      %s41 = int_to_ptr.vmem [resolvable:$true] %s40
      %46 = dma.hbm_to_vmem [thread:$0]  %s2, 768, %s41, [#allocation6], 128, 128, 8
    $region13: #{tpu_custom_call.1} parent=1 // pred_fallthru
      _
    // Predicated region
    $region14: #{tpu_custom_call.1} parent=1 // pred_check
      _
    $region15: #{tpu_custom_call.1} parent=1 // pred_check_branch
      %48 = sbr.rel (0) target = $region17
    $region16: #{tpu_custom_call.1} parent=1 // pred_region
      %s50 = ssub.s32 256, 256
      %51 = vsyncadd [#allocation9], %s50
      %s52 = sshll.u32 [#allocation8], 4
      %s53 = int_to_ptr.vmem [resolvable:$true] %s52
      %58 = dma.hbm_to_vmem [thread:$0]  %s3, 256, %s53, [#allocation9], 128, 128, 8
    $region17: #{tpu_custom_call.1} parent=1 // pred_fallthru
      _
    // Predicated region
    $region18: #{tpu_custom_call.1} parent=1 // pred_check
      _
    $region19: #{tpu_custom_call.1} parent=1 // pred_check_branch
      %60 = sbr.rel (0) target = $region21
    $region20: #{tpu_custom_call.1} parent=1 // pred_region
      %61 = dma.done [#allocation3], 2048
    $region21: #{tpu_custom_call.1} parent=1 // pred_fallthru
      _
    // Predicated region
    $region22: #{tpu_custom_call.1} parent=1 // pred_check
      _
    $region23: #{tpu_custom_call.1} parent=1 // pred_check_branch
      %63 = sbr.rel (0) target = $region25
    $region24: #{tpu_custom_call.1} parent=1 // pred_region
      %64 = dma.done [#allocation6], 128
    $region25: #{tpu_custom_call.1} parent=1 // pred_fallthru
      _
    // Predicated region
    $region26: #{tpu_custom_call.1} parent=1 // pred_check
      _
    $region27: #{tpu_custom_call.1} parent=1 // pred_check_branch
      %66 = sbr.rel (0) target = $region29
    $region28: #{tpu_custom_call.1} parent=1 // pred_region
      %67 = dma.done [#allocation6], 768
    $region29: #{tpu_custom_call.1} parent=1 // pred_fallthru
      _
    // Predicated region
    $region30: #{tpu_custom_call.1} parent=1 // pred_check
      _
    $region31: #{tpu_custom_call.1} parent=1 // pred_check_branch
      %69 = sbr.rel (0) target = $region33
    $region32: #{tpu_custom_call.1} parent=1 // pred_region
      %70 = dma.done [#allocation9], 256
    $region33: #{tpu_custom_call.1} parent=1 // pred_fallthru
      _
    %v71 = vld [vmem:[#allocation2] sm:$0xff]
    %v72 = vld [vmem:[#allocation2 + $0x8] sm:$0xff]
    %v73 = vld [vmem:[#allocation2 + $0x10] sm:$0xff]
    %v74 = vld [vmem:[#allocation2 + $0x18] sm:$0xff]
    %v75 = vld [vmem:[#allocation2 + $0x20] sm:$0xff]
    %v76 = vld [vmem:[#allocation2 + $0x28] sm:$0xff]
    %v77 = vld [vmem:[#allocation2 + $0x30] sm:$0xff]
    %v78 = vld [vmem:[#allocation2 + $0x38] sm:$0xff]
    %v79 = vld [vmem:[#allocation2 + $0x40] sm:$0xff]
    %v80 = vld [vmem:[#allocation2 + $0x48] sm:$0xff]
    %v81 = vld [vmem:[#allocation2 + $0x50] sm:$0xff]
    %v82 = vld [vmem:[#allocation2 + $0x58] sm:$0xff]
    %v83 = vld [vmem:[#allocation2 + $0x60] sm:$0xff]
    %v84 = vld [vmem:[#allocation2 + $0x68] sm:$0xff]
    %v85 = vld [vmem:[#allocation2 + $0x70] sm:$0xff]
    %v86 = vld [vmem:[#allocation2 + $0x78] sm:$0xff]
    %v87 = vld [vmem:[#allocation8] sm:$0xff]
    %v88 = vld [vmem:[#allocation8 + $0x8] sm:$0xff]
    %90 = vset.pattern.permute.xlu0 0
    %91 = vperm.xlu0 %90, %v87
    %v92 = vpop.permute.xlu0 %91
    %95 = vset.pattern.permute.xlu0 0
    %96 = vperm.xlu0 %95, %v88
    %v97 = vpop.permute.xlu0 %96
    %99 = vst [vmem:[#allocation10] sm:$0xff] %v92
    %100 = vst [vmem:[#allocation10 + $0x8] sm:$0xff] %v97
    %v101 = vld [vmem:[#allocation5] sm:$0xff]
    %v102 = vld [vmem:[#allocation10] sm:$0xff]
    %v103 = vld [vmem:[#allocation10 + $0x8] sm:$0xff]
    %v104 = vld [vmem:[#allocation7] sm:$0xff]
    %v105 = vld [vmem:[#allocation7 + $0x8] sm:$0xff]
    %vm106 = vcmask 64512
    %v108 = vsel %vm106, %v104, 0
    %v111 = vsel %vm106, %v105, 0
    %113 = vmatprep.subr.mxu0 0.0
    %114 = vmatpush1.msra.mxu0 %v101
    %115 = vmatprep.subr.mxu0 0.0
    %116 = vmatpush1.msra.mxu0 0.0
    %117 = vmatprep.subr.mxu0 0.0
    %118 = vmatpush1.msra.mxu0 0.0
    %119 = vmatprep.subr.mxu0 0.0
    %120 = vmatpush1.msra.mxu0 0.0
    %121 = vmatprep.subr.mxu0 0.0
    %122 = vmatpush1.msra.mxu0 0.0
    %123 = vmatprep.subr.mxu0 0.0
    %124 = vmatpush1.msra.mxu0 0.0
    %125 = vmatprep.subr.mxu0 0.0
    %126 = vmatpush1.msra.mxu0 0.0
    %127 = vmatprep.subr.mxu0 0.0
    %128 = vmatpush1.msra.mxu0 0.0
    %129 = vmatprep.subr.mxu0 0.0
    %130 = vmatpush1.msra.mxu0 0.0
    %131 = vmatprep.subr.mxu0 0.0
    %132 = vmatpush1.msra.mxu0 0.0
    %133 = vmatprep.subr.mxu0 0.0
    %134 = vmatpush1.msra.mxu0 0.0
    %135 = vmatprep.subr.mxu0 0.0
    %136 = vmatpush1.msra.mxu0 0.0
    %137 = vmatprep.subr.mxu0 0.0
    %138 = vmatpush1.msra.mxu0 0.0
    %139 = vmatprep.subr.mxu0 0.0
    %140 = vmatpush1.msra.mxu0 0.0
    %141 = vmatprep.subr.mxu0 0.0
    %142 = vmatpush1.msra.mxu0 0.0
    %143 = vmatprep.subr.mxu0 0.0
    %144 = vmatpush1.msra.mxu0 0.0
    %145 = vmatprep.subr.mxu0 0.0
    %146 = vmatpush1.msra.mxu0 0.0
    %147 = vmatprep.subr.mxu0 0.0
    %148 = vmatpush1.msra.mxu0 0.0
    %149 = vmatprep.subr.mxu0 0.0
    %150 = vmatpush1.msra.mxu0 0.0
    %151 = vmatprep.subr.mxu0 0.0
    %152 = vmatpush1.msra.mxu0 0.0
    %153 = vmatprep.subr.mxu0 0.0
    %154 = vmatpush1.msra.mxu0 0.0
    %155 = vmatprep.subr.mxu0 0.0
    %156 = vmatpush1.msra.mxu0 0.0
    %157 = vmatprep.subr.mxu0 0.0
    %158 = vmatpush1.msra.mxu0 0.0
    %159 = vmatprep.subr.mxu0 0.0
    %160 = vmatpush1.msra.mxu0 0.0
    %161 = vmatprep.subr.mxu0 0.0
    %162 = vmatpush1.msra.mxu0 0.0
    %163 = vmatprep.subr.mxu0 0.0
    %164 = vmatpush1.msra.mxu0 0.0
    %165 = vmatprep.subr.mxu0 0.0
    %166 = vmatpush1.msra.mxu0 0.0
    %167 = vmatprep.subr.mxu0 0.0
    %168 = vmatpush1.msra.mxu0 0.0
    %169 = vmatprep.subr.mxu0 0.0
    %170 = vmatpush1.msra.mxu0 0.0
    %171 = vmatprep.subr.mxu0 0.0
    %172 = vmatpush1.msra.mxu0 0.0
    %173 = vmatprep.subr.mxu0 0.0
    %174 = vmatpush1.msra.mxu0 0.0
    %175 = vmatprep.subr.mxu0 0.0
    %176 = vmatpush1.msra.mxu0 0.0
    %177 = vmatprep.mubr.f32.mxu0 0.0
    %178 = vmatmul.mubr.f32.gmra.mrb[0].mxu0 %v108
    %v179 = vpop.f32.mrb[0].mxu0
    %v180 = vadd.f32 0.0, %v179
    %v181 = vpop.f32.mrb[0].mxu0
    %182 = vmatprep.mubr.f32.mxu0 0.0
    %183 = vmatmul.mubr.f32.gmra.mrb[0].mxu0 %v111
    %v184 = vpop.f32.mrb[0].mxu0
    %v185 = vadd.f32 0.0, %v184
    %v186 = vpop.f32.mrb[0].mxu0
    %187 = vdwg.mxu0
    %v188 = vadd.f32 %v102, %v180
    %v189 = vadd.f32 %v103, %v185
    %190 = vst [vmem:[#allocation10] sm:$0xff] %v188
    %191 = vst [vmem:[#allocation10 + $0x8] sm:$0xff] %v189
    %192 = vmatprep.subr.mxu0 0.0
    %193 = vmatpush1.msra.mxu0 %v71
    %194 = vmatprep.subr.mxu0 0.0
    %195 = vmatpush1.msra.mxu0 %v72
    %196 = vmatprep.subr.mxu0 0.0
    %197 = vmatpush1.msra.mxu0 %v73
    %198 = vmatprep.subr.mxu0 0.0
    %199 = vmatpush1.msra.mxu0 %v74
    %200 = vmatprep.subr.mxu0 0.0
    %201 = vmatpush1.msra.mxu0 %v75
    %202 = vmatprep.subr.mxu0 0.0
    %203 = vmatpush1.msra.mxu0 %v76
    %204 = vmatprep.subr.mxu0 0.0
    %205 = vmatpush1.msra.mxu0 %v77
    %206 = vmatprep.subr.mxu0 0.0
    %207 = vmatpush1.msra.mxu0 %v78
    %208 = vmatprep.subr.mxu0 0.0
    %209 = vmatpush1.msra.mxu0 %v79
    %210 = vmatprep.subr.mxu0 0.0
    %211 = vmatpush1.msra.mxu0 %v80
    %212 = vmatprep.subr.mxu0 0.0
    %213 = vmatpush1.msra.mxu0 %v81
    %214 = vmatprep.subr.mxu0 0.0
    %215 = vmatpush1.msra.mxu0 %v82
    %216 = vmatprep.subr.mxu0 0.0
    %217 = vmatpush1.msra.mxu0 %v83
    %218 = vmatprep.subr.mxu0 0.0
    %219 = vmatpush1.msra.mxu0 %v84
    %220 = vmatprep.subr.mxu0 0.0
    %221 = vmatpush1.msra.mxu0 %v85
    %222 = vmatprep.subr.mxu0 0.0
    %223 = vmatpush1.msra.mxu0 %v86
    %224 = vmatprep.subr.mxu0 0.0
    %225 = vmatpush1.msra.mxu0 0.0
    %226 = vmatprep.subr.mxu0 0.0
    %227 = vmatpush1.msra.mxu0 0.0
    %228 = vmatprep.subr.mxu0 0.0
    %229 = vmatpush1.msra.mxu0 0.0
    %230 = vmatprep.subr.mxu0 0.0
    %231 = vmatpush1.msra.mxu0 0.0
    %232 = vmatprep.subr.mxu0 0.0
    %233 = vmatpush1.msra.mxu0 0.0
    %234 = vmatprep.subr.mxu0 0.0
    %235 = vmatpush1.msra.mxu0 0.0
    %236 = vmatprep.subr.mxu0 0.0
    %237 = vmatpush1.msra.mxu0 0.0
    %238 = vmatprep.subr.mxu0 0.0
    %239 = vmatpush1.msra.mxu0 0.0
    %240 = vmatprep.subr.mxu0 0.0
    %241 = vmatpush1.msra.mxu0 0.0
    %242 = vmatprep.subr.mxu0 0.0
    %243 = vmatpush1.msra.mxu0 0.0
    %244 = vmatprep.subr.mxu0 0.0
    %245 = vmatpush1.msra.mxu0 0.0
    %246 = vmatprep.subr.mxu0 0.0
    %247 = vmatpush1.msra.mxu0 0.0
    %248 = vmatprep.subr.mxu0 0.0
    %249 = vmatpush1.msra.mxu0 0.0
    %250 = vmatprep.subr.mxu0 0.0
    %251 = vmatpush1.msra.mxu0 0.0
    %252 = vmatprep.subr.mxu0 0.0
    %253 = vmatpush1.msra.mxu0 0.0
    %254 = vmatprep.subr.mxu0 0.0
    %255 = vmatpush1.msra.mxu0 0.0
    %256 = vmatprep.mubr.f32.mxu0 0.0
    %257 = vmatmul.mubr.f32.gmra.mrb[0].mxu0 %v101
    %v258 = vpop.f32.mrb[0].mxu0
    %v259 = vadd.f32 0.0, %v258
    %v260 = vpop.f32.mrb[0].mxu0
    %261 = vdwg.mxu0
    %v262 = vld [vmem:[#allocation10] sm:$0xff]
    %v263 = vld [vmem:[#allocation10 + $0x8] sm:$0xff]
    %s264 = scalar_lea.vmem [#allocation7], 16
    %v265 = vld [vmem:[%s264] sm:$0xff]
    %v266 = vld [vmem:[%s264 + $0x8] sm:$0xff]
    %v268 = vsel %vm106, %v265, 0
    %v271 = vsel %vm106, %v266, 0
    %273 = vmatprep.subr.mxu0 0.0
    %274 = vmatpush1.msra.mxu0 %v259
    %275 = vmatprep.subr.mxu0 0.0
    %276 = vmatpush1.msra.mxu0 0.0
    %277 = vmatprep.subr.mxu0 0.0
    %278 = vmatpush1.msra.mxu0 0.0
    %279 = vmatprep.subr.mxu0 0.0
    %280 = vmatpush1.msra.mxu0 0.0
    %281 = vmatprep.subr.mxu0 0.0
    %282 = vmatpush1.msra.mxu0 0.0
    %283 = vmatprep.subr.mxu0 0.0
    %284 = vmatpush1.msra.mxu0 0.0
    %285 = vmatprep.subr.mxu0 0.0
    %286 = vmatpush1.msra.mxu0 0.0
    %287 = vmatprep.subr.mxu0 0.0
    %288 = vmatpush1.msra.mxu0 0.0
    %289 = vmatprep.subr.mxu0 0.0
    %290 = vmatpush1.msra.mxu0 0.0
    %291 = vmatprep.subr.mxu0 0.0
    %292 = vmatpush1.msra.mxu0 0.0
    %293 = vmatprep.subr.mxu0 0.0
    %294 = vmatpush1.msra.mxu0 0.0
    %295 = vmatprep.subr.mxu0 0.0
    %296 = vmatpush1.msra.mxu0 0.0
    %297 = vmatprep.subr.mxu0 0.0
    %298 = vmatpush1.msra.mxu0 0.0
    %299 = vmatprep.subr.mxu0 0.0
    %300 = vmatpush1.msra.mxu0 0.0
    %301 = vmatprep.subr.mxu0 0.0
    %302 = vmatpush1.msra.mxu0 0.0
    %303 = vmatprep.subr.mxu0 0.0
    %304 = vmatpush1.msra.mxu0 0.0
    %305 = vmatprep.subr.mxu0 0.0
    %306 = vmatpush1.msra.mxu0 0.0
    %307 = vmatprep.subr.mxu0 0.0
    %308 = vmatpush1.msra.mxu0 0.0
    %309 = vmatprep.subr.mxu0 0.0
    %310 = vmatpush1.msra.mxu0 0.0
    %311 = vmatprep.subr.mxu0 0.0
    %312 = vmatpush1.msra.mxu0 0.0
    %313 = vmatprep.subr.mxu0 0.0
    %314 = vmatpush1.msra.mxu0 0.0
    %315 = vmatprep.subr.mxu0 0.0
    %316 = vmatpush1.msra.mxu0 0.0
    %317 = vmatprep.subr.mxu0 0.0
    %318 = vmatpush1.msra.mxu0 0.0
    %319 = vmatprep.subr.mxu0 0.0
    %320 = vmatpush1.msra.mxu0 0.0
    %321 = vmatprep.subr.mxu0 0.0
    %322 = vmatpush1.msra.mxu0 0.0
    %323 = vmatprep.subr.mxu0 0.0
    %324 = vmatpush1.msra.mxu0 0.0
    %325 = vmatprep.subr.mxu0 0.0
    %326 = vmatpush1.msra.mxu0 0.0
    %327 = vmatprep.subr.mxu0 0.0
    %328 = vmatpush1.msra.mxu0 0.0
    %329 = vmatprep.subr.mxu0 0.0
    %330 = vmatpush1.msra.mxu0 0.0
    %331 = vmatprep.subr.mxu0 0.0
    %332 = vmatpush1.msra.mxu0 0.0
    %333 = vmatprep.subr.mxu0 0.0
    %334 = vmatpush1.msra.mxu0 0.0
    %335 = vmatprep.subr.mxu0 0.0
    %336 = vmatpush1.msra.mxu0 0.0
    %337 = vmatprep.mubr.f32.mxu0 0.0
    %338 = vmatmul.mubr.f32.gmra.mrb[0].mxu0 %v268
    %v339 = vpop.f32.mrb[0].mxu0
    %v340 = vadd.f32 0.0, %v339
    %v341 = vpop.f32.mrb[0].mxu0
    %342 = vmatprep.mubr.f32.mxu0 0.0
    %343 = vmatmul.mubr.f32.gmra.mrb[0].mxu0 %v271
    %v344 = vpop.f32.mrb[0].mxu0
    %v345 = vadd.f32 0.0, %v344
    %v346 = vpop.f32.mrb[0].mxu0
    %347 = vdwg.mxu0
    %v348 = vadd.f32 %v262, %v340
    %v349 = vadd.f32 %v263, %v345
    %350 = vst [vmem:[#allocation10] sm:$0xff] %v348
    %351 = vst [vmem:[#allocation10 + $0x8] sm:$0xff] %v349
    %352 = vmatprep.subr.mxu0 0.0
    %353 = vmatpush1.msra.mxu0 %v71
    %354 = vmatprep.subr.mxu0 0.0
    %355 = vmatpush1.msra.mxu0 %v72
    %356 = vmatprep.subr.mxu0 0.0
    %357 = vmatpush1.msra.mxu0 %v73
    %358 = vmatprep.subr.mxu0 0.0
    %359 = vmatpush1.msra.mxu0 %v74
    %360 = vmatprep.subr.mxu0 0.0
    %361 = vmatpush1.msra.mxu0 %v75
    %362 = vmatprep.subr.mxu0 0.0
    %363 = vmatpush1.msra.mxu0 %v76
    %364 = vmatprep.subr.mxu0 0.0
    %365 = vmatpush1.msra.mxu0 %v77
    %366 = vmatprep.subr.mxu0 0.0
    %367 = vmatpush1.msra.mxu0 %v78
    %368 = vmatprep.subr.mxu0 0.0
    %369 = vmatpush1.msra.mxu0 %v79
    %370 = vmatprep.subr.mxu0 0.0
    %371 = vmatpush1.msra.mxu0 %v80
    %372 = vmatprep.subr.mxu0 0.0
    %373 = vmatpush1.msra.mxu0 %v81
    %374 = vmatprep.subr.mxu0 0.0
    %375 = vmatpush1.msra.mxu0 %v82
    %376 = vmatprep.subr.mxu0 0.0
    %377 = vmatpush1.msra.mxu0 %v83
    %378 = vmatprep.subr.mxu0 0.0
    %379 = vmatpush1.msra.mxu0 %v84
    %380 = vmatprep.subr.mxu0 0.0
    %381 = vmatpush1.msra.mxu0 %v85
    %382 = vmatprep.subr.mxu0 0.0
    %383 = vmatpush1.msra.mxu0 %v86
    %384 = vmatprep.subr.mxu0 0.0
    %385 = vmatpush1.msra.mxu0 0.0
    %386 = vmatprep.subr.mxu0 0.0
    %387 = vmatpush1.msra.mxu0 0.0
    %388 = vmatprep.subr.mxu0 0.0
    %389 = vmatpush1.msra.mxu0 0.0
    %390 = vmatprep.subr.mxu0 0.0
    %391 = vmatpush1.msra.mxu0 0.0
    %392 = vmatprep.subr.mxu0 0.0
    %393 = vmatpush1.msra.mxu0 0.0
    %394 = vmatprep.subr.mxu0 0.0
    %395 = vmatpush1.msra.mxu0 0.0
    %396 = vmatprep.subr.mxu0 0.0
    %397 = vmatpush1.msra.mxu0 0.0
    %398 = vmatprep.subr.mxu0 0.0
    %399 = vmatpush1.msra.mxu0 0.0
    %400 = vmatprep.subr.mxu0 0.0
    %401 = vmatpush1.msra.mxu0 0.0
    %402 = vmatprep.subr.mxu0 0.0
    %403 = vmatpush1.msra.mxu0 0.0
    %404 = vmatprep.subr.mxu0 0.0
    %405 = vmatpush1.msra.mxu0 0.0
    %406 = vmatprep.subr.mxu0 0.0
    %407 = vmatpush1.msra.mxu0 0.0
    %408 = vmatprep.subr.mxu0 0.0
    %409 = vmatpush1.msra.mxu0 0.0
    %410 = vmatprep.subr.mxu0 0.0
    %411 = vmatpush1.msra.mxu0 0.0
    %412 = vmatprep.subr.mxu0 0.0
    %413 = vmatpush1.msra.mxu0 0.0
    %414 = vmatprep.subr.mxu0 0.0
    %415 = vmatpush1.msra.mxu0 0.0
    %416 = vmatprep.mubr.f32.mxu0 0.0
    %417 = vmatmul.mubr.f32.gmra.mrb[0].mxu0 %v259
    %v418 = vpop.f32.mrb[0].mxu0
    %v419 = vadd.f32 0.0, %v418
    %v420 = vpop.f32.mrb[0].mxu0
    %421 = vdwg.mxu0
    %v422 = vld [vmem:[#allocation10] sm:$0xff]
    %v423 = vld [vmem:[#allocation10 + $0x8] sm:$0xff]
    %s424 = scalar_lea.vmem [#allocation7], 32
    %v425 = vld [vmem:[%s424] sm:$0xff]
    %v426 = vld [vmem:[%s424 + $0x8] sm:$0xff]
    %v428 = vsel %vm106, %v425, 0
    %v431 = vsel %vm106, %v426, 0
    %433 = vmatprep.subr.mxu0 0.0
    %434 = vmatpush1.msra.mxu0 %v419
    %435 = vmatprep.subr.mxu0 0.0
    %436 = vmatpush1.msra.mxu0 0.0
    %437 = vmatprep.subr.mxu0 0.0
    %438 = vmatpush1.msra.mxu0 0.0
    %439 = vmatprep.subr.mxu0 0.0
    %440 = vmatpush1.msra.mxu0 0.0
    %441 = vmatprep.subr.mxu0 0.0
    %442 = vmatpush1.msra.mxu0 0.0
    %443 = vmatprep.subr.mxu0 0.0
    %444 = vmatpush1.msra.mxu0 0.0
    %445 = vmatprep.subr.mxu0 0.0
    %446 = vmatpush1.msra.mxu0 0.0
    %447 = vmatprep.subr.mxu0 0.0
    %448 = vmatpush1.msra.mxu0 0.0
    %449 = vmatprep.subr.mxu0 0.0
    %450 = vmatpush1.msra.mxu0 0.0
    %451 = vmatprep.subr.mxu0 0.0
    %452 = vmatpush1.msra.mxu0 0.0
    %453 = vmatprep.subr.mxu0 0.0
    %454 = vmatpush1.msra.mxu0 0.0
    %455 = vmatprep.subr.mxu0 0.0
    %456 = vmatpush1.msra.mxu0 0.0
    %457 = vmatprep.subr.mxu0 0.0
    %458 = vmatpush1.msra.mxu0 0.0
    %459 = vmatprep.subr.mxu0 0.0
    %460 = vmatpush1.msra.mxu0 0.0
    %461 = vmatprep.subr.mxu0 0.0
    %462 = vmatpush1.msra.mxu0 0.0
    %463 = vmatprep.subr.mxu0 0.0
    %464 = vmatpush1.msra.mxu0 0.0
    %465 = vmatprep.subr.mxu0 0.0
    %466 = vmatpush1.msra.mxu0 0.0
    %467 = vmatprep.subr.mxu0 0.0
    %468 = vmatpush1.msra.mxu0 0.0
    %469 = vmatprep.subr.mxu0 0.0
    %470 = vmatpush1.msra.mxu0 0.0
    %471 = vmatprep.subr.mxu0 0.0
    %472 = vmatpush1.msra.mxu0 0.0
    %473 = vmatprep.subr.mxu0 0.0
    %474 = vmatpush1.msra.mxu0 0.0
    %475 = vmatprep.subr.mxu0 0.0
    %476 = vmatpush1.msra.mxu0 0.0
    %477 = vmatprep.subr.mxu0 0.0
    %478 = vmatpush1.msra.mxu0 0.0
    %479 = vmatprep.subr.mxu0 0.0
    %480 = vmatpush1.msra.mxu0 0.0
    %481 = vmatprep.subr.mxu0 0.0
    %482 = vmatpush1.msra.mxu0 0.0
    %483 = vmatprep.subr.mxu0 0.0
    %484 = vmatpush1.msra.mxu0 0.0
    %485 = vmatprep.subr.mxu0 0.0
    %486 = vmatpush1.msra.mxu0 0.0
    %487 = vmatprep.subr.mxu0 0.0
    %488 = vmatpush1.msra.mxu0 0.0
    %489 = vmatprep.subr.mxu0 0.0
    %490 = vmatpush1.msra.mxu0 0.0
    %491 = vmatprep.subr.mxu0 0.0
    %492 = vmatpush1.msra.mxu0 0.0
    %493 = vmatprep.subr.mxu0 0.0
    %494 = vmatpush1.msra.mxu0 0.0
    %495 = vmatprep.subr.mxu0 0.0
    %496 = vmatpush1.msra.mxu0 0.0
    %497 = vmatprep.mubr.f32.mxu0 0.0
    %498 = vmatmul.mubr.f32.gmra.mrb[0].mxu0 %v428
    %v499 = vpop.f32.mrb[0].mxu0
    %v500 = vadd.f32 0.0, %v499
    %v501 = vpop.f32.mrb[0].mxu0
    %502 = vmatprep.mubr.f32.mxu0 0.0
    %503 = vmatmul.mubr.f32.gmra.mrb[0].mxu0 %v431
    %v504 = vpop.f32.mrb[0].mxu0
    %v505 = vadd.f32 0.0, %v504
    %v506 = vpop.f32.mrb[0].mxu0
    %507 = vdwg.mxu0
    %v508 = vadd.f32 %v422, %v500
    %v509 = vadd.f32 %v423, %v505
    %510 = vst [vmem:[#allocation10] sm:$0xff] %v508
    %511 = vst [vmem:[#allocation10 + $0x8] sm:$0xff] %v509
    // Predicated region
    $region34: #{tpu_custom_call.1} parent=1 // pred_check
      _
    $region35: #{tpu_custom_call.1} parent=1 // pred_check_branch
      %513 = sbr.rel (0) target = $region37
    $region36: #{tpu_custom_call.1} parent=1 // pred_region
      %s515 = ssub.s32 256, 256
      %516 = vsyncadd [#allocation4], %s515
      %s517 = sshll.u32 [#allocation10], 4
      %s518 = int_to_ptr.vmem [resolvable:$true] %s517
      %523 = dma.vmem_to_hbm [thread:$0]  %s518, 256, %s4, [#allocation4], 128, 128, 8
    $region37: #{tpu_custom_call.1} parent=1 // pred_fallthru
      _
    // Predicated region
    $region38: #{tpu_custom_call.1} parent=1 // pred_check
      _
    $region39: #{tpu_custom_call.1} parent=1 // pred_check_branch
      %525 = sbr.rel (0) target = $region41
    $region40: #{tpu_custom_call.1} parent=1 // pred_region
      %526 = dma.done [#allocation4], 256
    $region41: #{tpu_custom_call.1} parent=1 // pred_fallthru
      _
    %527 = vsyncpa [#allocation3], 1
    %528 = vsyncpa [#allocation6], 1
    %529 = vsyncpa [#allocation9], 1
    %530 = vsyncpa [#allocation4], 1

</llo_original>
